<compile_context>
chip_gen: v6e
topology: v6e:2x2x1
jax: 0.10.0
libtpu: 0.0.40
codegen_flags: <defaults>
</compile_context>

<pallas_src>
import numpy as np
import jax
import jax.numpy as jnp
from jax.experimental import pallas as pl
from jax.experimental.pallas import tpu as pltpu

_LANES = 128


def _nlin_kernel(x_ref, ps_ref, w_ref, o_ref):
    """x_ref: (tile_r, 128) interleaved [r,i,r,i,...] samples.
    ps_ref: (128,128) block-diagonal pair-sum (2x2 all-ones blocks).
    w_ref:  (128,128) block-diagonal fused leakage weight (2C x 2C blocks)."""
    x = x_ref[...]
    sq = x * x
    # amp[l] = r_c^2 + i_c^2 broadcast to both lanes of channel c's (r,i) pair.
    amp = jnp.dot(sq, ps_ref[...], preferred_element_type=jnp.float32)
    d = amp * x  # cubic distortion, still interleaved
    o_ref[...] = jnp.dot(
        d, w_ref[...], preferred_element_type=jnp.float32
    ).astype(o_ref.dtype)


def _build_constants(weights, n_channels, lanes=_LANES):
    """Builds the two 128x128 constants.  Pure jnp on the weights -> jittable."""
    C = n_channels
    group = 2 * C
    reps = lanes // group

    # Selection tensor E[c, idx, d] = 1 iff the idx-th "other" channel of c is d.
    E_np = np.zeros((C, C - 1, C), dtype=np.float32)
    for c in range(C):
        others = [d for d in range(C) if d != c]
        E_np[c, np.arange(C - 1), others] = 1.0
    E = jnp.asarray(E_np)

    W = jnp.stack([jnp.asarray(w, jnp.float32) for w in weights])  # (C, 2, 2(C-1))
    Wr = W[:, :, : C - 1]      # coefficients on real parts of the other channels
    Wi = W[:, :, C - 1:]       # coefficients on imag parts of the other channels

    # Pr[c,p,d] = W_c[p, idx_c(d)]       (0 when d == c)
    # Pi[c,p,d] = W_c[p, (C-1)+idx_c(d)] (0 when d == c)
    Pr = jnp.einsum("cpk,ckd->cpd", Wr, E)
    Pi = jnp.einsum("cpk,ckd->cpd", Wi, E)
    # P[2c+p, 2d+q] : coefficient of d-lane (2d+q) feeding output lane (2c+p)
    P = jnp.stack([Pr, Pi], axis=-1).reshape(group, group)

    # out_row = d_row @ w_full, block-diagonal copies of P^T per sample group.
    w_full = jnp.kron(jnp.eye(reps, dtype=jnp.float32), P.T)          # (128,128)
    # amp_row = sq_row @ ps_full, block-diagonal 2x2 all-ones.
    ps_full = jnp.asarray(
        np.kron(np.eye(lanes // 2, dtype=np.float32),
                np.ones((2, 2), dtype=np.float32)))                   # (128,128)
    return ps_full, w_full


def linear_leakage_nlin_core(x, weights, *, tile_rows=2048):
    """x: (B, S, C, 2) float32. weights: list of C arrays (2, 2*(C-1)).

    tile_rows: rows (of 128 lanes) per grid block; multiple of 8.  2048 rows
    = 1 MiB per block (256K samples), ~4.3 MiB double-buffered VMEM total.
    Small inputs collapse to a single minimally-padded block.
    """
    B, S, C, two = x.shape
    assert two == 2
    assert C >= 2
    group = 2 * C
    # TODO(synk): n_channels where 2*C does not divide 128 (and output_size
    # != 2, which the torch module itself cannot express consistently) would
    # need a padded-group lane layout; not implemented.
    assert _LANES % group == 0, "2*n_channels must divide 128"
    assert tile_rows % 8 == 0

    ps_full, w_full = _build_constants(weights, C)

    total = B * S * group
    rows = pl.cdiv(total, _LANES)
    if rows <= tile_rows:
        tile_r = ((rows + 7) // 8) * 8      # single block, minimal padding
    else:
        tile_r = tile_rows
    rows_p = pl.cdiv(rows, tile_r) * tile_r
    padded_total = rows_p * _LANES

    flat = x.reshape(total)                 # free: x is contiguous
    if padded_total != total:
        flat = jnp.pad(flat, (0, padded_total - total))
    x2d = flat.reshape(rows_p, _LANES)

    out2d = pl.pallas_call(
        _nlin_kernel,
        out_shape=jax.ShapeDtypeStruct((rows_p, _LANES), x.dtype),
        grid_spec=pltpu.PrefetchScalarGridSpec(
            num_scalar_prefetch=0,
            grid=(rows_p // tile_r,),
            in_specs=[
                pl.BlockSpec((tile_r, _LANES), lambda i: (i, 0)),
                pl.BlockSpec((_LANES, _LANES), lambda i: (0, 0)),  # pair-sum
                pl.BlockSpec((_LANES, _LANES), lambda i: (0, 0)),  # fused W
            ],
            out_specs=pl.BlockSpec((tile_r, _LANES), lambda i: (i, 0)),
        ),
        compiler_params=pltpu.CompilerParams(
            dimension_semantics=("parallel",)),
    )(x2d, ps_full, w_full)

    out_flat = out2d.reshape(padded_total)
    if padded_total != total:
        out_flat = out_flat[:total]
    return out_flat.reshape(B, S, C, 2)


def reference_forward(x, weights):
    """Pure-JAX replica of the torch forward loop, for correctness checking."""
    B, S, C, _ = x.shape
    xr = x[..., 0]
    xi = x[..., 1]
    amp = xr ** 2 + xi ** 2
    dr = amp * xr
    di = amp * xi
    out = jnp.zeros_like(x)
    for c in range(C):
        others = [cp for cp in range(C) if cp != c]
        fr = dr[:, :, others]                              # (B, S, C-1)
        fi = di[:, :, others]
        tot = jnp.concatenate([fr, fi], axis=-1)           # (B, S, 2*(C-1))
        co = jnp.einsum("bsk,ok->bso", tot, weights[c])    # (B, S, 2)
        out = out.at[:, :, c, 0].set(co[..., 0])
        out = out.at[:, :, c, 1].set(co[..., 1])
    return out


if __name__ == "__main__":
    seq_len = 8
    output_size = 2
    n_channels = 4
    batch = 2

    key = jax.random.PRNGKey(0)
    kx, *kws = jax.random.split(key, 1 + n_channels)

    # x: (B, S, C, 2)
    x = jax.random.normal(kx, (batch, seq_len, n_channels, 2), dtype=jnp.float32)

    # Per-channel Linear weights, shape (output_size, output_size*(C-1))
    weights = [
        jax.random.normal(kws[c], (output_size, output_size * (n_channels - 1)),
                          dtype=jnp.float32) * 0.1
        for c in range(n_channels)
    ]

    fwd = jax.jit(linear_leakage_nlin_core)
    out = fwd(x, weights)
    out = jax.block_until_ready(out)

    ref = reference_forward(x, weights)
    assert out.shape == x.shape
    err = jnp.max(jnp.abs(out - ref))
    assert jnp.allclose(out, ref, atol=1e-3, rtol=1e-3), f"max err {err}"
    print("KERNEL_OK")
</pallas_src>

<mosaic_0001>
module attributes {stable_mosaic.version = 11 : i64} {
  func.func @_nlin_kernel(%arg0: i32, %arg1: memref<8x128xf32, #tpu.memory_space<vmem>>, %arg2: memref<128x128xf32, #tpu.memory_space<vmem>>, %arg3: memref<128x128xf32, #tpu.memory_space<vmem>>, %arg4: memref<8x128xf32, #tpu.memory_space<vmem>>) attributes {dimension_semantics = [#tpu.dimension_semantics<parallel>], iteration_bounds = array<i64: 1>, scalar_prefetch = 0 : i64, scratch_operands = 0 : i64, tpu.core_type = #tpu.core_type<tc>, window_params = [{transform_indices = @transform_0, window_bounds = array<i64: 8, 128>}, {pipeline_mode = #tpu.pipeline_mode<synchronous>, transform_indices = @transform_1, window_bounds = array<i64: 128, 128>}, {pipeline_mode = #tpu.pipeline_mode<synchronous>, transform_indices = @transform_2, window_bounds = array<i64: 128, 128>}, {transform_indices = @transform_3, window_bounds = array<i64: 8, 128>}]} {
    %c0 = arith.constant 0 : index
    %c0_0 = arith.constant 0 : index
    %0 = vector.load %arg1[%c0, %c0_0] : memref<8x128xf32, #tpu.memory_space<vmem>>, vector<8x128xf32>
    %1 = arith.mulf %0, %0 : vector<8x128xf32>
    %c0_1 = arith.constant 0 : index
    %c0_2 = arith.constant 0 : index
    %2 = vector.load %arg2[%c0_1, %c0_2] : memref<128x128xf32, #tpu.memory_space<vmem>>, vector<128x128xf32>
    %cst = arith.constant dense<0.000000e+00> : vector<8x128xf32>
    %3 = tpu.matmul %1, %2, %cst {dimension_numbers = #tpu.dot_dimension_numbers<[1], [0], [0], [1], [0, 0, 1, 1], [], []>} : vector<8x128xf32>, vector<128x128xf32>, vector<8x128xf32> -> vector<8x128xf32>
    %4 = arith.mulf %3, %0 : vector<8x128xf32>
    %c0_3 = arith.constant 0 : index
    %c0_4 = arith.constant 0 : index
    %5 = vector.load %arg3[%c0_3, %c0_4] : memref<128x128xf32, #tpu.memory_space<vmem>>, vector<128x128xf32>
    %cst_5 = arith.constant dense<0.000000e+00> : vector<8x128xf32>
    %6 = tpu.matmul %4, %5, %cst_5 {dimension_numbers = #tpu.dot_dimension_numbers<[1], [0], [0], [1], [0, 0, 1, 1], [], []>} : vector<8x128xf32>, vector<128x128xf32>, vector<8x128xf32> -> vector<8x128xf32>
    %c0_6 = arith.constant 0 : index
    %c0_7 = arith.constant 0 : index
    %7 = vector.load %arg4[%c0_6, %c0_7] : memref<8x128xf32, #tpu.memory_space<vmem>>, vector<8x128xf32>
    tpu.vector_store %arg4[%c0_6, %c0_7], %6 {strides = array<i32>} : memref<8x128xf32, #tpu.memory_space<vmem>>, vector<8x128xf32>,
    return
  }
  func.func @transform_0(%arg0: i32) -> (i32, i32) {
    %c0_i32 = arith.constant 0 : i32
    %c0_i32_0 = arith.constant 0 : i32
    return %arg0, %c0_i32 : i32, i32
  }
  func.func @transform_1(%arg0: i32) -> (i32, i32) {
    %c0_i32 = arith.constant 0 : i32
    %c0_i32_0 = arith.constant 0 : i32
    %c0_i32_1 = arith.constant 0 : i32
    return %c0_i32, %c0_i32_0 : i32, i32
  }
  func.func @transform_2(%arg0: i32) -> (i32, i32) {
    %c0_i32 = arith.constant 0 : i32
    %c0_i32_0 = arith.constant 0 : i32
    %c0_i32_1 = arith.constant 0 : i32
    return %c0_i32, %c0_i32_0 : i32, i32
  }
  func.func @transform_3(%arg0: i32) -> (i32, i32) {
    %c0_i32 = arith.constant 0 : i32
    %c0_i32_0 = arith.constant 0 : i32
    return %arg0, %c0_i32 : i32, i32
  }
}

</mosaic_0001>

<llo_original>
// kernel: linear_leakage_nlin_core.1
$region0: #{linear_leakage_nlin_core.1}
  #allocation0 [shape = 'u32[]', space=smem, size = 0x4, offset = 0x4, fixed_abs, tag = 'smem constant byte address 0x4 - core index']
  #allocation1 [shape = 'u32[144,128]{1,0:T(1,128)}', space=vmem, size = 0x12000, scoped, tag = 'internal scratch']
  %s0 = inlined_call_operand.vmem [shape: f32[8,128], index: 0, kind: input, shape index: {}]
  %s1 = inlined_call_operand.vmem [shape: f32[128,128], index: 1, kind: input, shape index: {}]
  %s2 = inlined_call_operand.vmem [shape: f32[128,128], index: 2, kind: input, shape index: {}]
  %s3 = inlined_call_operand.vmem [shape: f32[8,128], index: 3, kind: output, shape index: {}]
  %s4 = sld [smem:[#allocation0]]
  $region22: #{linear_leakage_nlin_core.1} parent=0
    _
  %s6 = ssub.s32 1, %s4
  %s7 = scalar_select 0, %s6, %s4
  // Predicated region
  $region2: #{linear_leakage_nlin_core.1} parent=0 // pred_check
    _
  $region3: #{linear_leakage_nlin_core.1} parent=0 // pred_check_branch
    %9 = sbr.rel (0) target = $region5
  $region4: #{linear_leakage_nlin_core.1} parent=0 // pred_region
    _
  $region5: #{linear_leakage_nlin_core.1} parent=0 // pred_fallthru
    _
  // Predicated region
  $region6: #{linear_leakage_nlin_core.1} parent=0 // pred_check
    _
  $region7: #{linear_leakage_nlin_core.1} parent=0 // pred_check_branch
    %11 = sbr.rel (0) target = $region9
  $region8: #{linear_leakage_nlin_core.1} parent=0 // pred_region
    _
  $region9: #{linear_leakage_nlin_core.1} parent=0 // pred_fallthru
    _
  // Predicated region
  $region10: #{linear_leakage_nlin_core.1} parent=0 // pred_check
    _
  $region11: #{linear_leakage_nlin_core.1} parent=0 // pred_check_branch
    %13 = sbr.rel (0) target = $region13
  $region12: #{linear_leakage_nlin_core.1} parent=0 // pred_region
    _
  $region13: #{linear_leakage_nlin_core.1} parent=0 // pred_fallthru
    _
  %v14 = vld [vmem:[%s0] sm:$0xff]
  %v15 = vmul.f32 %v14, %v14
  %v16 = vld [vmem:[%s1] sm:$0xff]
  %v17 = vld [vmem:[%s1 + $0x8] sm:$0xff]
  %v18 = vld [vmem:[%s1 + $0x10] sm:$0xff]
  %v19 = vld [vmem:[%s1 + $0x18] sm:$0xff]
  %v20 = vld [vmem:[%s1 + $0x20] sm:$0xff]
  %v21 = vld [vmem:[%s1 + $0x28] sm:$0xff]
  %v22 = vld [vmem:[%s1 + $0x30] sm:$0xff]
  %v23 = vld [vmem:[%s1 + $0x38] sm:$0xff]
  %v24 = vld [vmem:[%s1 + $0x40] sm:$0xff]
  %v25 = vld [vmem:[%s1 + $0x48] sm:$0xff]
  %v26 = vld [vmem:[%s1 + $0x50] sm:$0xff]
  %v27 = vld [vmem:[%s1 + $0x58] sm:$0xff]
  %v28 = vld [vmem:[%s1 + $0x60] sm:$0xff]
  %v29 = vld [vmem:[%s1 + $0x68] sm:$0xff]
  %v30 = vld [vmem:[%s1 + $0x70] sm:$0xff]
  %v31 = vld [vmem:[%s1 + $0x78] sm:$0xff]
  %32 = vmatprep.subr.mxu0 0.0
  %33 = vmatpush1.msra.mxu0 %v31
  %34 = vmatprep.subr.mxu0 0.0
  %35 = vmatpush1.msra.mxu0 %v30
  %36 = vmatprep.subr.mxu0 0.0
  %37 = vmatpush1.msra.mxu0 %v29
  %38 = vmatprep.subr.mxu0 0.0
  %39 = vmatpush1.msra.mxu0 %v28
  %40 = vmatprep.subr.mxu0 0.0
  %41 = vmatpush1.msra.mxu0 %v27
  %42 = vmatprep.subr.mxu0 0.0
  %43 = vmatpush1.msra.mxu0 %v26
  %44 = vmatprep.subr.mxu0 0.0
  %45 = vmatpush1.msra.mxu0 %v25
  %46 = vmatprep.subr.mxu0 0.0
  %47 = vmatpush1.msra.mxu0 %v24
  %48 = vmatprep.subr.mxu0 0.0
  %49 = vmatpush1.msra.mxu0 %v23
  %50 = vmatprep.subr.mxu0 0.0
  %51 = vmatpush1.msra.mxu0 %v22
  %52 = vmatprep.subr.mxu0 0.0
  %53 = vmatpush1.msra.mxu0 %v21
  %54 = vmatprep.subr.mxu0 0.0
  %55 = vmatpush1.msra.mxu0 %v20
  %56 = vmatprep.subr.mxu0 0.0
  %57 = vmatpush1.msra.mxu0 %v19
  %58 = vmatprep.subr.mxu0 0.0
  %59 = vmatpush1.msra.mxu0 %v18
  %60 = vmatprep.subr.mxu0 0.0
  %61 = vmatpush1.msra.mxu0 %v17
  %62 = vmatprep.subr.mxu0 0.0
  %63 = vmatpush1.msra.mxu0 %v16
  %64 = vmatprep.subr.mxu0 0.0
  %65 = vmatpush2.msra.mxu0 0.0
  %66 = vmatprep.subr.mxu0 0.0
  %67 = vmatpush2.msra.mxu0 0.0
  %68 = vmatprep.subr.mxu0 0.0
  %69 = vmatpush2.msra.mxu0 0.0
  %70 = vmatprep.subr.mxu0 0.0
  %71 = vmatpush2.msra.mxu0 0.0
  %72 = vmatprep.subr.mxu0 0.0
  %73 = vmatpush2.msra.mxu0 0.0
  %74 = vmatprep.subr.mxu0 0.0
  %75 = vmatpush2.msra.mxu0 0.0
  %76 = vmatprep.subr.mxu0 0.0
  %77 = vmatpush2.msra.mxu0 0.0
  %78 = vmatprep.subr.mxu0 0.0
  %79 = vmatpush2.msra.mxu0 0.0
  %80 = vmatprep.subr.mxu0 0.0
  %81 = vmatpush2.msra.mxu0 0.0
  %82 = vmatprep.subr.mxu0 0.0
  %83 = vmatpush2.msra.mxu0 0.0
  %84 = vmatprep.subr.mxu0 0.0
  %85 = vmatpush2.msra.mxu0 0.0
  %86 = vmatprep.subr.mxu0 0.0
  %87 = vmatpush2.msra.mxu0 0.0
  %88 = vmatprep.subr.mxu0 0.0
  %89 = vmatpush2.msra.mxu0 0.0
  %90 = vmatprep.subr.mxu0 0.0
  %91 = vmatpush2.msra.mxu0 0.0
  %92 = vmatprep.subr.mxu0 0.0
  %93 = vmatpush2.msra.mxu0 0.0
  %94 = vmatprep.subr.mxu0 0.0
  %95 = vmatpush2.msra.mxu0 0.0
  %96 = vmatprep.mubr.f32.mxu0 0.0
  %97 = vmatmul.mubr.f32.gmra.mxu0 %v15
  %v98 = vpop.f32.mrf.mxu0
  %v99 = vadd.f32 0.0, %v98
  %v100 = vpop.f32.mrf.mxu0
  %101 = vdwg.mxu0
  %v102 = vmul.f32 %v99, %v14
  %v103 = vld [vmem:[%s2] sm:$0xff]
  %v104 = vld [vmem:[%s2 + $0x8] sm:$0xff]
  %v105 = vld [vmem:[%s2 + $0x10] sm:$0xff]
  %v106 = vld [vmem:[%s2 + $0x18] sm:$0xff]
  %v107 = vld [vmem:[%s2 + $0x20] sm:$0xff]
  %v108 = vld [vmem:[%s2 + $0x28] sm:$0xff]
  %v109 = vld [vmem:[%s2 + $0x30] sm:$0xff]
  %v110 = vld [vmem:[%s2 + $0x38] sm:$0xff]
  %v111 = vld [vmem:[%s2 + $0x40] sm:$0xff]
  %v112 = vld [vmem:[%s2 + $0x48] sm:$0xff]
  %v113 = vld [vmem:[%s2 + $0x50] sm:$0xff]
  %v114 = vld [vmem:[%s2 + $0x58] sm:$0xff]
  %v115 = vld [vmem:[%s2 + $0x60] sm:$0xff]
  %v116 = vld [vmem:[%s2 + $0x68] sm:$0xff]
  %v117 = vld [vmem:[%s2 + $0x70] sm:$0xff]
  %v118 = vld [vmem:[%s2 + $0x78] sm:$0xff]
  %119 = vmatprep.subr.mxu0 0.0
  %120 = vmatpush1.msra.mxu0 %v118
  %121 = vmatprep.subr.mxu0 0.0
  %122 = vmatpush1.msra.mxu0 %v117
  %123 = vmatprep.subr.mxu0 0.0
  %124 = vmatpush1.msra.mxu0 %v116
  %125 = vmatprep.subr.mxu0 0.0
  %126 = vmatpush1.msra.mxu0 %v115
  %127 = vmatprep.subr.mxu0 0.0
  %128 = vmatpush1.msra.mxu0 %v114
  %129 = vmatprep.subr.mxu0 0.0
  %130 = vmatpush1.msra.mxu0 %v113
  %131 = vmatprep.subr.mxu0 0.0
  %132 = vmatpush1.msra.mxu0 %v112
  %133 = vmatprep.subr.mxu0 0.0
  %134 = vmatpush1.msra.mxu0 %v111
  %135 = vmatprep.subr.mxu0 0.0
  %136 = vmatpush1.msra.mxu0 %v110
  %137 = vmatprep.subr.mxu0 0.0
  %138 = vmatpush1.msra.mxu0 %v109
  %139 = vmatprep.subr.mxu0 0.0
  %140 = vmatpush1.msra.mxu0 %v108
  %141 = vmatprep.subr.mxu0 0.0
  %142 = vmatpush1.msra.mxu0 %v107
  %143 = vmatprep.subr.mxu0 0.0
  %144 = vmatpush1.msra.mxu0 %v106
  %145 = vmatprep.subr.mxu0 0.0
  %146 = vmatpush1.msra.mxu0 %v105
  %147 = vmatprep.subr.mxu0 0.0
  %148 = vmatpush1.msra.mxu0 %v104
  %149 = vmatprep.subr.mxu0 0.0
  %150 = vmatpush1.msra.mxu0 %v103
  %151 = vmatprep.subr.mxu0 0.0
  %152 = vmatpush2.msra.mxu0 0.0
  %153 = vmatprep.subr.mxu0 0.0
  %154 = vmatpush2.msra.mxu0 0.0
  %155 = vmatprep.subr.mxu0 0.0
  %156 = vmatpush2.msra.mxu0 0.0
  %157 = vmatprep.subr.mxu0 0.0
  %158 = vmatpush2.msra.mxu0 0.0
  %159 = vmatprep.subr.mxu0 0.0
  %160 = vmatpush2.msra.mxu0 0.0
  %161 = vmatprep.subr.mxu0 0.0
  %162 = vmatpush2.msra.mxu0 0.0
  %163 = vmatprep.subr.mxu0 0.0
  %164 = vmatpush2.msra.mxu0 0.0
  %165 = vmatprep.subr.mxu0 0.0
  %166 = vmatpush2.msra.mxu0 0.0
  %167 = vmatprep.subr.mxu0 0.0
  %168 = vmatpush2.msra.mxu0 0.0
  %169 = vmatprep.subr.mxu0 0.0
  %170 = vmatpush2.msra.mxu0 0.0
  %171 = vmatprep.subr.mxu0 0.0
  %172 = vmatpush2.msra.mxu0 0.0
  %173 = vmatprep.subr.mxu0 0.0
  %174 = vmatpush2.msra.mxu0 0.0
  %175 = vmatprep.subr.mxu0 0.0
  %176 = vmatpush2.msra.mxu0 0.0
  %177 = vmatprep.subr.mxu0 0.0
  %178 = vmatpush2.msra.mxu0 0.0
  %179 = vmatprep.subr.mxu0 0.0
  %180 = vmatpush2.msra.mxu0 0.0
  %181 = vmatprep.subr.mxu0 0.0
  %182 = vmatpush2.msra.mxu0 0.0
  %183 = vmatprep.mubr.f32.mxu0 0.0
  %184 = vmatmul.mubr.f32.gmra.mxu0 %v102
  %v185 = vpop.f32.mrf.mxu0
  %v186 = vadd.f32 0.0, %v185
  %v187 = vpop.f32.mrf.mxu0
  %188 = vdwg.mxu0
  %189 = vst [vmem:[%s3] sm:$0xff] %v186
  // Predicated region
  $region14: #{linear_leakage_nlin_core.1} parent=0 // pred_check
    _
  $region15: #{linear_leakage_nlin_core.1} parent=0 // pred_check_branch
    %191 = sbr.rel (0) target = $region17
  $region16: #{linear_leakage_nlin_core.1} parent=0 // pred_region
    _
  $region17: #{linear_leakage_nlin_core.1} parent=0 // pred_fallthru
    _
  // Predicated region
  $region18: #{linear_leakage_nlin_core.1} parent=0 // pred_check
    _
  $region19: #{linear_leakage_nlin_core.1} parent=0 // pred_check_branch
    %193 = sbr.rel (0) target = $region21
  $region20: #{linear_leakage_nlin_core.1} parent=0 // pred_region
    _
  $region21: #{linear_leakage_nlin_core.1} parent=0 // pred_fallthru
    _

</llo_original>
